<compile_context>
chip_gen: v7x
topology: tpu7x:2x2x1
jax: 0.10.0
libtpu: 0.0.40
codegen_flags: <defaults>
</compile_context>

<pallas_src>
import functools
import math

import jax
import jax.numpy as jnp
from jax.experimental import pallas as pl
from jax.experimental.pallas import tpu as pltpu


def _round_up(v, m):
    return (v + m - 1) // m * m


# --------------------------------------------------------------------------- #
# Kernel body: refs = (x, w0, b0, w1, b1, ..., w_{L-1}, b_{L-1}, out)
# --------------------------------------------------------------------------- #
def _mlp_fused_kernel(*refs, num_layers):
    x_ref = refs[0]
    o_ref = refs[-1]
    wb = refs[1:-1]

    # In-kernel bf16 cast (VPU) — avoids a separate wrapper cast pass over x.
    h = x_ref[...].astype(jnp.bfloat16)          # (tm, K0) bf16
    for i in range(num_layers):                  # static unroll over layers
        w = wb[2 * i][...]                       # (Kin, Kout) bf16
        b = wb[2 * i + 1][...]                   # (1, Kout)   f32
        y = jnp.dot(h, w, preferred_element_type=jnp.float32) + b
        if i < num_layers - 1:
            h = jnp.maximum(y, 0.0).astype(jnp.bfloat16)   # bf16 into next MXU dot
        else:
            h = y                                          # last layer stays f32
    o_ref[...] = h.astype(o_ref.dtype)


# --------------------------------------------------------------------------- #
# Parameter handling
# --------------------------------------------------------------------------- #
def init_mlp_params(key, input_dim, hidden_dim, output_dim, num_layers):
    """Matches nn.Linear default init (uniform +/- 1/sqrt(fan_in)).
    Weights stored as (in, out), i.e. transpose of PyTorch's .weight."""
    h = [hidden_dim] * (num_layers - 1)
    dims = list(zip([input_dim] + h, h + [output_dim]))
    params = []
    for (n_in, n_out) in dims:
        key, kw, kb = jax.random.split(key, 3)
        bound = 1.0 / math.sqrt(n_in)
        w = jax.random.uniform(kw, (n_in, n_out), jnp.float32, -bound, bound)
        b = jax.random.uniform(kb, (n_out,), jnp.float32, -bound, bound)
        params.append((w, b))
    return params


def prepare_mlp_params(params):
    """One-time prep, hoisted out of the forward pass: cast weights to bf16
    (MXU operands) and reshape biases to (1, N) f32 for in-kernel broadcast."""
    return [(w.astype(jnp.bfloat16), b.reshape(1, -1).astype(jnp.float32))
            for (w, b) in params]


# --------------------------------------------------------------------------- #
# Forward wrapper
# --------------------------------------------------------------------------- #
def _choose_tm(M, cap=256):
    """Row-tile size. Small M -> one full-extent block (always a legal block
    dim). Larger M -> 128/256 rows so the 'parallel' grid has >=4 pipelined
    steps (DMA hidden behind compute; both v7x TCs busy). Cap 256 keeps f32
    intermediates small enough to avoid vreg spills / v5e's 16 MiB limit."""
    if M <= cap:
        return M
    return 256 if pl.cdiv(M, 256) >= 4 else 128


def mlp_forward(prepared_params, x, *, out_dtype=jnp.float32, tm_cap=256):
    """x: (..., input_dim); prepared_params: list of (W(in,out) bf16, b(1,out) f32)."""
    num_layers = len(prepared_params)
    lead_shape = x.shape[:-1]
    x2d = x.reshape(-1, x.shape[-1])
    M, K0 = x2d.shape
    out_dim = prepared_params[-1][0].shape[1]

    tm = _choose_tm(M, tm_cap)
    grid = (pl.cdiv(M, tm),)     # partial last tile is masked by Pallas/Mosaic

    in_specs = [pl.BlockSpec((tm, K0), lambda i: (i, 0))]
    flat_wb = []
    # VMEM budget estimate (double-buffered x/out + resident weights + temps).
    vmem_bytes = 2 * tm * K0 * x2d.dtype.itemsize
    for (w, b) in prepared_params:
        kin, kout = w.shape
        # Constant block index: weights/biases stay VMEM-resident across row
        # tiles (DMA'd once, not per step).
        in_specs += [pl.BlockSpec((kin, kout), lambda i: (0, 0)),
                     pl.BlockSpec((1, kout), lambda i: (0, 0))]
        flat_wb += [w, b]
        vmem_bytes += 2 * (kin * kout * 2 + kout * 4)          # W/b buffers
        vmem_bytes += tm * _round_up(kout, 128) * 6            # f32 + bf16 temps
    vmem_bytes += 2 * tm * _round_up(out_dim, 128) * jnp.dtype(out_dtype).itemsize
    # Explicit limit: >= default scoped limits, <= v7x's 64 MiB physical VMEM.
    vmem_limit = int(min(max(2 * vmem_bytes, 16 * 2**20), 64 * 2**20))

    out = pl.pallas_call(
        functools.partial(_mlp_fused_kernel, num_layers=num_layers),
        out_shape=jax.ShapeDtypeStruct((M, out_dim), out_dtype),
        grid=grid,
        in_specs=in_specs,
        out_specs=pl.BlockSpec((tm, out_dim), lambda i: (i, 0)),
        compiler_params=pltpu.CompilerParams(
            dimension_semantics=("parallel",),     # shard row tiles across TCs (v7x)
            vmem_limit_bytes=vmem_limit),
    )(x2d, *flat_wb)

    return out.reshape(*lead_shape, out_dim)


def mlp_reference(params, x):
    """Pure f32 JAX reference matching the PyTorch module."""
    num_layers = len(params)
    for i, (w, b) in enumerate(params):
        x = x @ w + b
        if i < num_layers - 1:
            x = jnp.maximum(x, 0.0)
    return x


if __name__ == "__main__":
    key = jax.random.PRNGKey(0)
    k_params, k_x, k_p2, k_x2 = jax.random.split(key, 4)

    # --- Small spec-sized check: batch=2, seq=8, 16 -> 32 -> 32 -> 4 --------
    input_dim, hidden_dim, output_dim, num_layers = 16, 32, 4, 3
    params = init_mlp_params(k_params, input_dim, hidden_dim, output_dim, num_layers)
    prepared = prepare_mlp_params(params)          # one-time prep (hoisted)
    x = jax.random.normal(k_x, (2, 8, input_dim), jnp.float32)

    out = jax.block_until_ready(mlp_forward(prepared, x))
    ref = mlp_reference(params, x)
    assert out.shape == (2, 8, output_dim), out.shape
    # Tolerance loosened vs the pure-f32 reference: bf16 MXU operands with
    # f32 accumulation (per perf review).
    assert jnp.allclose(out, ref, atol=3e-2, rtol=3e-2), "mismatch vs reference (small)"

    # --- gen_vlkt-like bbox-head shapes: 256 -> 256 -> 256 -> 4, M=1200 -----
    # Exercises the multi-step pipelined grid (tm=256, 5 steps) including the
    # masked partial last row tile.
    params2 = init_mlp_params(k_p2, 256, 256, 4, 3)
    prepared2 = prepare_mlp_params(params2)
    x2 = jax.random.normal(k_x2, (4, 300, 256), jnp.float32)

    out2 = jax.block_until_ready(mlp_forward(prepared2, x2))
    ref2 = mlp_reference(params2, x2)
    assert out2.shape == (4, 300, 4), out2.shape
    assert jnp.allclose(out2, ref2, atol=3e-2, rtol=3e-2), "mismatch vs reference (large)"

    print("KERNEL_OK")
</pallas_src>

<mosaic_0001>
module attributes {stable_mosaic.version = 11 : i64} {
  func.func @_mlp_fused_kernel(%arg0: i32, %arg1: memref<16x16xf32, #tpu.memory_space<vmem>>, %arg2: memref<16x32xbf16, #tpu.memory_space<vmem>>, %arg3: memref<1x32xf32, #tpu.memory_space<vmem>>, %arg4: memref<32x32xbf16, #tpu.memory_space<vmem>>, %arg5: memref<1x32xf32, #tpu.memory_space<vmem>>, %arg6: memref<32x4xbf16, #tpu.memory_space<vmem>>, %arg7: memref<1x4xf32, #tpu.memory_space<vmem>>, %arg8: memref<16x4xf32, #tpu.memory_space<vmem>>) attributes {dimension_semantics = [#tpu.dimension_semantics<parallel>], iteration_bounds = array<i64: 1>, scalar_prefetch = 0 : i64, scratch_operands = 0 : i64, tpu.core_type = #tpu.core_type<tc>, window_params = [{transform_indices = @transform_0, window_bounds = array<i64: 16, 16>}, {pipeline_mode = #tpu.pipeline_mode<synchronous>, transform_indices = @transform_1, window_bounds = array<i64: 16, 32>}, {pipeline_mode = #tpu.pipeline_mode<synchronous>, transform_indices = @transform_2, window_bounds = array<i64: 1, 32>}, {pipeline_mode = #tpu.pipeline_mode<synchronous>, transform_indices = @transform_3, window_bounds = array<i64: 32, 32>}, {pipeline_mode = #tpu.pipeline_mode<synchronous>, transform_indices = @transform_4, window_bounds = array<i64: 1, 32>}, {pipeline_mode = #tpu.pipeline_mode<synchronous>, transform_indices = @transform_5, window_bounds = array<i64: 32, 4>}, {pipeline_mode = #tpu.pipeline_mode<synchronous>, transform_indices = @transform_6, window_bounds = array<i64: 1, 4>}, {transform_indices = @transform_7, window_bounds = array<i64: 16, 4>}]} {
    %c0 = arith.constant 0 : index
    %c0_0 = arith.constant 0 : index
    %0 = vector.load %arg1[%c0, %c0_0] : memref<16x16xf32, #tpu.memory_space<vmem>>, vector<16x16xf32>
    %1 = arith.truncf %0 : vector<16x16xf32> to vector<16x16xbf16>
    %c0_1 = arith.constant 0 : index
    %c0_2 = arith.constant 0 : index
    %2 = vector.load %arg2[%c0_1, %c0_2] : memref<16x32xbf16, #tpu.memory_space<vmem>>, vector<16x32xbf16>
    %c0_3 = arith.constant 0 : index
    %c0_4 = arith.constant 0 : index
    %3 = vector.load %arg3[%c0_3, %c0_4] : memref<1x32xf32, #tpu.memory_space<vmem>>, vector<1x32xf32>
    %cst = arith.constant dense<0.000000e+00> : vector<16x32xf32>
    %4 = tpu.matmul %1, %2, %cst {dimension_numbers = #tpu.dot_dimension_numbers<[1], [0], [0], [1], [0, 0, 1, 1], [], []>} : vector<16x16xbf16>, vector<16x32xbf16>, vector<16x32xf32> -> vector<16x32xf32>
    %5 = vector.broadcast %3 : vector<1x32xf32> to vector<16x32xf32>
    %6 = arith.addf %4, %5 : vector<16x32xf32>
    %cst_5 = arith.constant 0.000000e+00 : f32
    %7 = vector.broadcast %cst_5 : f32 to vector<16x32xf32>
    %8 = arith.maximumf %6, %7 : vector<16x32xf32>
    %9 = arith.truncf %8 : vector<16x32xf32> to vector<16x32xbf16>
    %c0_6 = arith.constant 0 : index
    %c0_7 = arith.constant 0 : index
    %10 = vector.load %arg4[%c0_6, %c0_7] : memref<32x32xbf16, #tpu.memory_space<vmem>>, vector<32x32xbf16>
    %c0_8 = arith.constant 0 : index
    %c0_9 = arith.constant 0 : index
    %11 = vector.load %arg5[%c0_8, %c0_9] : memref<1x32xf32, #tpu.memory_space<vmem>>, vector<1x32xf32>
    %cst_10 = arith.constant dense<0.000000e+00> : vector<16x32xf32>
    %12 = tpu.matmul %9, %10, %cst_10 {dimension_numbers = #tpu.dot_dimension_numbers<[1], [0], [0], [1], [0, 0, 1, 1], [], []>} : vector<16x32xbf16>, vector<32x32xbf16>, vector<16x32xf32> -> vector<16x32xf32>
    %13 = vector.broadcast %11 : vector<1x32xf32> to vector<16x32xf32>
    %14 = arith.addf %12, %13 : vector<16x32xf32>
    %cst_11 = arith.constant 0.000000e+00 : f32
    %15 = vector.broadcast %cst_11 : f32 to vector<16x32xf32>
    %16 = arith.maximumf %14, %15 : vector<16x32xf32>
    %17 = arith.truncf %16 : vector<16x32xf32> to vector<16x32xbf16>
    %c0_12 = arith.constant 0 : index
    %c0_13 = arith.constant 0 : index
    %18 = vector.load %arg6[%c0_12, %c0_13] : memref<32x4xbf16, #tpu.memory_space<vmem>>, vector<32x4xbf16>
    %c0_14 = arith.constant 0 : index
    %c0_15 = arith.constant 0 : index
    %19 = vector.load %arg7[%c0_14, %c0_15] : memref<1x4xf32, #tpu.memory_space<vmem>>, vector<1x4xf32>
    %cst_16 = arith.constant dense<0.000000e+00> : vector<16x4xf32>
    %20 = tpu.matmul %17, %18, %cst_16 {dimension_numbers = #tpu.dot_dimension_numbers<[1], [0], [0], [1], [0, 0, 1, 1], [], []>} : vector<16x32xbf16>, vector<32x4xbf16>, vector<16x4xf32> -> vector<16x4xf32>
    %21 = vector.broadcast %19 : vector<1x4xf32> to vector<16x4xf32>
    %22 = arith.addf %20, %21 : vector<16x4xf32>
    %c0_17 = arith.constant 0 : index
    %c0_18 = arith.constant 0 : index
    %23 = vector.load %arg8[%c0_17, %c0_18] : memref<16x4xf32, #tpu.memory_space<vmem>>, vector<16x4xf32>
    tpu.vector_store %arg8[%c0_17, %c0_18], %22 {strides = array<i32>} : memref<16x4xf32, #tpu.memory_space<vmem>>, vector<16x4xf32>,
    return
  }
  func.func @transform_0(%arg0: i32) -> (i32, i32) {
    %c0_i32 = arith.constant 0 : i32
    %c0_i32_0 = arith.constant 0 : i32
    return %arg0, %c0_i32 : i32, i32
  }
  func.func @transform_1(%arg0: i32) -> (i32, i32) {
    %c0_i32 = arith.constant 0 : i32
    %c0_i32_0 = arith.constant 0 : i32
    %c0_i32_1 = arith.constant 0 : i32
    return %c0_i32, %c0_i32_0 : i32, i32
  }
  func.func @transform_2(%arg0: i32) -> (i32, i32) {
    %c0_i32 = arith.constant 0 : i32
    %c0_i32_0 = arith.constant 0 : i32
    %c0_i32_1 = arith.constant 0 : i32
    return %c0_i32, %c0_i32_0 : i32, i32
  }
  func.func @transform_3(%arg0: i32) -> (i32, i32) {
    %c0_i32 = arith.constant 0 : i32
    %c0_i32_0 = arith.constant 0 : i32
    %c0_i32_1 = arith.constant 0 : i32
    return %c0_i32, %c0_i32_0 : i32, i32
  }
  func.func @transform_4(%arg0: i32) -> (i32, i32) {
    %c0_i32 = arith.constant 0 : i32
    %c0_i32_0 = arith.constant 0 : i32
    %c0_i32_1 = arith.constant 0 : i32
    return %c0_i32, %c0_i32_0 : i32, i32
  }
  func.func @transform_5(%arg0: i32) -> (i32, i32) {
    %c0_i32 = arith.constant 0 : i32
    %c0_i32_0 = arith.constant 0 : i32
    %c0_i32_1 = arith.constant 0 : i32
    return %c0_i32, %c0_i32_0 : i32, i32
  }
  func.func @transform_6(%arg0: i32) -> (i32, i32) {
    %c0_i32 = arith.constant 0 : i32
    %c0_i32_0 = arith.constant 0 : i32
    %c0_i32_1 = arith.constant 0 : i32
    return %c0_i32, %c0_i32_0 : i32, i32
  }
  func.func @transform_7(%arg0: i32) -> (i32, i32) {
    %c0_i32 = arith.constant 0 : i32
    %c0_i32_0 = arith.constant 0 : i32
    return %arg0, %c0_i32 : i32, i32
  }
}

</mosaic_0001>

<llo_original>
// kernel: tpu_custom_call.1
$region0: #{tpu_custom_call.1}
  #allocation0 [shape = 'u32[]', space=smem, size = 0x4, offset = 0x4, fixed_abs, tag = 'smem constant byte address 0x4 - core index']
  #allocation1 [shape = 'u32[144,128]{1,0:T(1,128)}', space=vmem, size = 0x12000, scoped, tag = 'internal scratch']
  %s0 = inlined_call_operand.vmem [shape: f32[16,16], index: 0, kind: input, shape index: {}]
  %s1 = inlined_call_operand.hbm [shape: bf16[16,32], index: 1, kind: input, shape index: {}]
  %s2 = inlined_call_operand.vmem [shape: f32[1,32], index: 2, kind: input, shape index: {}]
  %s3 = inlined_call_operand.hbm [shape: bf16[32,32], index: 3, kind: input, shape index: {}]
  %s4 = inlined_call_operand.vmem [shape: f32[1,32], index: 4, kind: input, shape index: {}]
  %s5 = inlined_call_operand.vmem [shape: bf16[32,4], index: 5, kind: input, shape index: {}]
  %s6 = inlined_call_operand.vmem [shape: f32[1,4], index: 6, kind: input, shape index: {}]
  %s7 = inlined_call_operand.vmem [shape: f32[16,4], index: 7, kind: output, shape index: {}]
  %s8 = sld [smem:[#allocation0]]
  $region46: #{tpu_custom_call.1} parent=0
    _
  %s10 = ssub.s32 1, %s8
  %s11 = scalar_select 0, %s10, %s8
  $region1: #{tpu_custom_call.1} parent=0
    #allocation2 [shape = 'u8[4096]{0}', space=vmem, size = 0x1000, scoped, tag = 'input window, operand 1, single buffered']
    #allocation3 [shape = 's32[1]{0}', space=sflag, size = 0x4, scoped, tag = 'scoped memory for tpu_custom_call.1']
    #allocation4 [shape = 'u8[8192]{0}', space=vmem, size = 0x2000, scoped, tag = 'input window, operand 3, single buffered']
    #allocation5 [shape = 's32[1]{0}', space=sflag, size = 0x4, scoped, tag = 'scoped memory for tpu_custom_call.1']
    %12 = vsyncpa [#allocation3], 0
    %13 = vsyncpa [#allocation5], 0
    // Predicated region
    $region2: #{tpu_custom_call.1} parent=1 // pred_check
      _
    $region3: #{tpu_custom_call.1} parent=1 // pred_check_branch
      %15 = sbr.rel (0) target = $region5
    $region4: #{tpu_custom_call.1} parent=1 // pred_region
      _
    $region5: #{tpu_custom_call.1} parent=1 // pred_fallthru
      _
    // Predicated region
    $region6: #{tpu_custom_call.1} parent=1 // pred_check
      _
    $region7: #{tpu_custom_call.1} parent=1 // pred_check_branch
      %17 = sbr.rel (0) target = $region9
    $region8: #{tpu_custom_call.1} parent=1 // pred_region
      %s19 = ssub.s32 128, 128
      %20 = vsyncadd [#allocation3], %s19
      %s21 = sshll.u32 [#allocation2], 4
      %s22 = int_to_ptr.vmem [resolvable:$true] %s21
      %27 = dma.hbm_to_vmem [thread:$0]  %s1, 128, %s22, [#allocation3], 64, 64, 4
    $region9: #{tpu_custom_call.1} parent=1 // pred_fallthru
      _
    // Predicated region
    $region10: #{tpu_custom_call.1} parent=1 // pred_check
      _
    $region11: #{tpu_custom_call.1} parent=1 // pred_check_branch
      %29 = sbr.rel (0) target = $region13
    $region12: #{tpu_custom_call.1} parent=1 // pred_region
      _
    $region13: #{tpu_custom_call.1} parent=1 // pred_fallthru
      _
    // Predicated region
    $region14: #{tpu_custom_call.1} parent=1 // pred_check
      _
    $region15: #{tpu_custom_call.1} parent=1 // pred_check_branch
      %31 = sbr.rel (0) target = $region17
    $region16: #{tpu_custom_call.1} parent=1 // pred_region
      %s33 = ssub.s32 256, 256
      %34 = vsyncadd [#allocation5], %s33
      %s35 = sshll.u32 [#allocation4], 4
      %s36 = int_to_ptr.vmem [resolvable:$true] %s35
      %41 = dma.hbm_to_vmem [thread:$0]  %s3, 256, %s36, [#allocation5], 64, 64, 4
    $region17: #{tpu_custom_call.1} parent=1 // pred_fallthru
      _
    // Predicated region
    $region18: #{tpu_custom_call.1} parent=1 // pred_check
      _
    $region19: #{tpu_custom_call.1} parent=1 // pred_check_branch
      %43 = sbr.rel (0) target = $region21
    $region20: #{tpu_custom_call.1} parent=1 // pred_region
      _
    $region21: #{tpu_custom_call.1} parent=1 // pred_fallthru
      _
    // Predicated region
    $region22: #{tpu_custom_call.1} parent=1 // pred_check
      _
    $region23: #{tpu_custom_call.1} parent=1 // pred_check_branch
      %45 = sbr.rel (0) target = $region25
    $region24: #{tpu_custom_call.1} parent=1 // pred_region
      _
    $region25: #{tpu_custom_call.1} parent=1 // pred_fallthru
      _
    // Predicated region
    $region26: #{tpu_custom_call.1} parent=1 // pred_check
      _
    $region27: #{tpu_custom_call.1} parent=1 // pred_check_branch
      %47 = sbr.rel (0) target = $region29
    $region28: #{tpu_custom_call.1} parent=1 // pred_region
      _
    $region29: #{tpu_custom_call.1} parent=1 // pred_fallthru
      _
    // Predicated region
    $region30: #{tpu_custom_call.1} parent=1 // pred_check
      _
    $region31: #{tpu_custom_call.1} parent=1 // pred_check_branch
      %49 = sbr.rel (0) target = $region33
    $region32: #{tpu_custom_call.1} parent=1 // pred_region
      %50 = dma.done [#allocation3], 128
    $region33: #{tpu_custom_call.1} parent=1 // pred_fallthru
      _
    // Predicated region
    $region34: #{tpu_custom_call.1} parent=1 // pred_check
      _
    $region35: #{tpu_custom_call.1} parent=1 // pred_check_branch
      %52 = sbr.rel (0) target = $region37
    $region36: #{tpu_custom_call.1} parent=1 // pred_region
      %53 = dma.done [#allocation5], 256
    $region37: #{tpu_custom_call.1} parent=1 // pred_fallthru
      _
    %v55 = vld [vmem:[%s0] sm:$0xff]
    %v56 = vld [vmem:[%s0 + $0x8] sm:$0xff]
    %v57 = vpack.c.bf16 %v56, %v55
    %v58 = vld [vmem:[#allocation2] sm:$0xf]
    %v59 = vld [vmem:[#allocation2 + $0x4] sm:$0xf]
    %v60 = vld [vmem:[%s2] sm:$0x1]
    %v62 = vlaneseq
    %v63 = vshrl.u32 %v62, 7
    %v64 = vsub.s32 0, %v63
    %v65 = vrot.slane %v60, %v64
    %v69 = vunpack.c.l.b16 %v58
    %v70 = vunpack.c.l.b16 %v59
    %v71 = vpack.c.b16 %v70, %v69
    %vm73 = vcmask 130048
    %v75 = vsel %vm73, %v57, 0
    %77 = vmatprep.subr.bf16.mxu0 0
    %78 = vmatpush1.bf16.msra.mxu0 %v71
    %79 = vmatprep.subr.bf16.mxu0 0
    %80 = vmatpush1.bf16.msra.mxu0 0
    %81 = vmatprep.subr.bf16.mxu0 0
    %82 = vmatpush1.bf16.msra.mxu0 0
    %83 = vmatprep.subr.bf16.mxu0 0
    %84 = vmatpush1.bf16.msra.mxu0 0
    %85 = vmatprep.subr.bf16.mxu0 0
    %86 = vmatpush1.bf16.msra.mxu0 0
    %87 = vmatprep.subr.bf16.mxu0 0
    %88 = vmatpush1.bf16.msra.mxu0 0
    %89 = vmatprep.subr.bf16.mxu0 0
    %90 = vmatpush1.bf16.msra.mxu0 0
    %91 = vmatprep.subr.bf16.mxu0 0
    %92 = vmatpush1.bf16.msra.mxu0 0
    %93 = vmatprep.subr.bf16.mxu0 0
    %94 = vmatpush1.bf16.msra.mxu0 0
    %95 = vmatprep.subr.bf16.mxu0 0
    %96 = vmatpush1.bf16.msra.mxu0 0
    %97 = vmatprep.subr.bf16.mxu0 0
    %98 = vmatpush1.bf16.msra.mxu0 0
    %99 = vmatprep.subr.bf16.mxu0 0
    %100 = vmatpush1.bf16.msra.mxu0 0
    %101 = vmatprep.subr.bf16.mxu0 0
    %102 = vmatpush1.bf16.msra.mxu0 0
    %103 = vmatprep.subr.bf16.mxu0 0
    %104 = vmatpush1.bf16.msra.mxu0 0
    %105 = vmatprep.subr.bf16.mxu0 0
    %106 = vmatpush1.bf16.msra.mxu0 0
    %107 = vmatprep.subr.bf16.mxu0 0
    %108 = vmatpush1.bf16.msra.mxu0 0
    %109 = vmatprep.mubr.bf16.mxu0 0
    %110 = vmatmul.mubr.bf16.gmra.mrb[0].mxu0 %v75
    %v111 = vpop.f32.mrb[0].mxu0
    %v112 = vadd.f32 %v65, %v111
    %v113 = vpop.f32.mrb[0].mxu0
    %v114 = vpop.f32.mrb[0].mxu0
    %v115 = vadd.f32 %v65, %v114
    %v116 = vpop.f32.mrb[0].mxu0
    %117 = vdwg.mxu0
    %v118 = vmax.f32 %v112, 0.0
    %v119 = vmax.f32 %v115, 0.0
    %v120 = vpack.c.bf16 %v119, %v118
    %v121 = vld [vmem:[#allocation4] sm:$0xf]
    %v122 = vld [vmem:[#allocation4 + $0x4] sm:$0xf]
    %v123 = vld [vmem:[#allocation4 + $0x8] sm:$0xf]
    %v124 = vld [vmem:[#allocation4 + $0xc] sm:$0xf]
    %v125 = vld [vmem:[%s4] sm:$0x1]
    %v127 = vlaneseq
    %v128 = vshrl.u32 %v127, 7
    %v129 = vsub.s32 0, %v128
    %v130 = vrot.slane %v125, %v129
    %v136 = vunpack.c.l.b16 %v121
    %v137 = vunpack.c.l.b16 %v122
    %v138 = vunpack.c.l.b16 %v123
    %v139 = vunpack.c.l.b16 %v124
    %v140 = vpack.c.b16 %v137, %v136
    %v141 = vpack.c.b16 %v139, %v138
    %vm144 = vcmask 261120
    %v146 = vsel %vm144, %v120, 0
    %148 = vmatprep.subr.bf16.mxu0 0
    %149 = vmatpush1.bf16.msra.mxu0 %v140
    %150 = vmatprep.subr.bf16.mxu0 0
    %151 = vmatpush1.bf16.msra.mxu0 %v141
    %152 = vmatprep.subr.bf16.mxu0 0
    %153 = vmatpush1.bf16.msra.mxu0 0
    %154 = vmatprep.subr.bf16.mxu0 0
    %155 = vmatpush1.bf16.msra.mxu0 0
    %156 = vmatprep.subr.bf16.mxu0 0
    %157 = vmatpush1.bf16.msra.mxu0 0
    %158 = vmatprep.subr.bf16.mxu0 0
    %159 = vmatpush1.bf16.msra.mxu0 0
    %160 = vmatprep.subr.bf16.mxu0 0
    %161 = vmatpush1.bf16.msra.mxu0 0
    %162 = vmatprep.subr.bf16.mxu0 0
    %163 = vmatpush1.bf16.msra.mxu0 0
    %164 = vmatprep.subr.bf16.mxu0 0
    %165 = vmatpush1.bf16.msra.mxu0 0
    %166 = vmatprep.subr.bf16.mxu0 0
    %167 = vmatpush1.bf16.msra.mxu0 0
    %168 = vmatprep.subr.bf16.mxu0 0
    %169 = vmatpush1.bf16.msra.mxu0 0
    %170 = vmatprep.subr.bf16.mxu0 0
    %171 = vmatpush1.bf16.msra.mxu0 0
    %172 = vmatprep.subr.bf16.mxu0 0
    %173 = vmatpush1.bf16.msra.mxu0 0
    %174 = vmatprep.subr.bf16.mxu0 0
    %175 = vmatpush1.bf16.msra.mxu0 0
    %176 = vmatprep.subr.bf16.mxu0 0
    %177 = vmatpush1.bf16.msra.mxu0 0
    %178 = vmatprep.subr.bf16.mxu0 0
    %179 = vmatpush1.bf16.msra.mxu0 0
    %180 = vmatprep.mubr.bf16.mxu0 0
    %181 = vmatmul.mubr.bf16.gmra.mrb[0].mxu0 %v146
    %v182 = vpop.f32.mrb[0].mxu0
    %v183 = vadd.f32 %v130, %v182
    %v184 = vpop.f32.mrb[0].mxu0
    %v185 = vpop.f32.mrb[0].mxu0
    %v186 = vadd.f32 %v130, %v185
    %v187 = vpop.f32.mrb[0].mxu0
    %188 = vdwg.mxu0
    %v189 = vmax.f32 %v183, 0.0
    %v190 = vmax.f32 %v186, 0.0
    %v191 = vpack.c.bf16 %v190, %v189
    %v192 = vld [vmem:[%s5] sm:$0xf]
    %v193 = vld [vmem:[%s5 + $0x4] sm:$0xf]
    %v194 = vld [vmem:[%s5 + $0x8] sm:$0xf]
    %v195 = vld [vmem:[%s5 + $0xc] sm:$0xf]
    %v196 = vld [vmem:[%s6] sm:$0x1]
    %v198 = vlaneseq
    %v199 = vshrl.u32 %v198, 7
    %v200 = vsub.s32 0, %v199
    %v201 = vrot.slane %v196, %v200
    %v207 = vunpack.c.l.b16 %v192
    %v208 = vunpack.c.l.b16 %v193
    %v209 = vunpack.c.l.b16 %v194
    %v210 = vunpack.c.l.b16 %v195
    %v211 = vpack.c.b16 %v208, %v207
    %v212 = vpack.c.b16 %v210, %v209
    %v216 = vsel %vm144, %v191, 0
    %218 = vmatprep.subr.bf16.mxu0 0
    %219 = vmatpush1.bf16.msra.mxu0 %v211
    %220 = vmatprep.subr.bf16.mxu0 0
    %221 = vmatpush1.bf16.msra.mxu0 %v212
    %222 = vmatprep.subr.bf16.mxu0 0
    %223 = vmatpush1.bf16.msra.mxu0 0
    %224 = vmatprep.subr.bf16.mxu0 0
    %225 = vmatpush1.bf16.msra.mxu0 0
    %226 = vmatprep.subr.bf16.mxu0 0
    %227 = vmatpush1.bf16.msra.mxu0 0
    %228 = vmatprep.subr.bf16.mxu0 0
    %229 = vmatpush1.bf16.msra.mxu0 0
    %230 = vmatprep.subr.bf16.mxu0 0
    %231 = vmatpush1.bf16.msra.mxu0 0
    %232 = vmatprep.subr.bf16.mxu0 0
    %233 = vmatpush1.bf16.msra.mxu0 0
    %234 = vmatprep.subr.bf16.mxu0 0
    %235 = vmatpush1.bf16.msra.mxu0 0
    %236 = vmatprep.subr.bf16.mxu0 0
    %237 = vmatpush1.bf16.msra.mxu0 0
    %238 = vmatprep.subr.bf16.mxu0 0
    %239 = vmatpush1.bf16.msra.mxu0 0
    %240 = vmatprep.subr.bf16.mxu0 0
    %241 = vmatpush1.bf16.msra.mxu0 0
    %242 = vmatprep.subr.bf16.mxu0 0
    %243 = vmatpush1.bf16.msra.mxu0 0
    %244 = vmatprep.subr.bf16.mxu0 0
    %245 = vmatpush1.bf16.msra.mxu0 0
    %246 = vmatprep.subr.bf16.mxu0 0
    %247 = vmatpush1.bf16.msra.mxu0 0
    %248 = vmatprep.subr.bf16.mxu0 0
    %249 = vmatpush1.bf16.msra.mxu0 0
    %250 = vmatprep.mubr.bf16.mxu0 0
    %251 = vmatmul.mubr.bf16.gmra.mrb[0].mxu0 %v216
    %v252 = vpop.f32.mrb[0].mxu0
    %v253 = vadd.f32 %v201, %v252
    %v254 = vpop.f32.mrb[0].mxu0
    %v255 = vpop.f32.mrb[0].mxu0
    %v256 = vadd.f32 %v201, %v255
    %v257 = vpop.f32.mrb[0].mxu0
    %258 = vdwg.mxu0
    %vm259 = vcmask 31744
    %260 = vst.msk [vmem:[%s7] sm:$0xff] %vm259, %v253
    %261 = vst.msk [vmem:[%s7 + $0x8] sm:$0xff] %vm259, %v256
    // Predicated region
    $region38: #{tpu_custom_call.1} parent=1 // pred_check
      _
    $region39: #{tpu_custom_call.1} parent=1 // pred_check_branch
      %263 = sbr.rel (0) target = $region41
    $region40: #{tpu_custom_call.1} parent=1 // pred_region
      _
    $region41: #{tpu_custom_call.1} parent=1 // pred_fallthru
      _
    // Predicated region
    $region42: #{tpu_custom_call.1} parent=1 // pred_check
      _
    $region43: #{tpu_custom_call.1} parent=1 // pred_check_branch
      %265 = sbr.rel (0) target = $region45
    $region44: #{tpu_custom_call.1} parent=1 // pred_region
      _
    $region45: #{tpu_custom_call.1} parent=1 // pred_fallthru
      _
    %266 = vsyncpa [#allocation3], 1
    %267 = vsyncpa [#allocation5], 1

</llo_original>
